<compile_context>
chip_gen: v5e
topology: v5e:2x2
jax: 0.10.0
libtpu: 0.0.40
codegen_flags: <defaults>
</compile_context>

<pallas_src>
import functools
import math

import jax
import jax.numpy as jnp
from jax.experimental import pallas as pl
from jax.experimental.pallas import tpu as pltpu

LANES = 128          # lane width
TILE_R_MAX = 8192    # up to 8192x128 rows per step (f32: 4 MiB per input block)
ACC_ROWS_MAX = 128   # accumulator slab rows (16 independent f32 vreg chains)


def _num_tensorcores():
    """Best-effort TensorCores-per-chip (2 on v7x, 1 on v5e/v6e); default 1."""
    try:
        get_info = getattr(pltpu, "get_tpu_info", None)
        if get_info is None:
            return 1
        info = get_info()
        for attr in ("num_tensorcores", "tensorcore_count", "num_cores",
                     "cores_per_chip", "core_count"):
            v = getattr(info, attr, None)
            if v is not None:
                try:
                    v = int(v)
                except (TypeError, ValueError):
                    continue
                if 1 <= v <= 16:
                    return v
        if "7" in str(getattr(info, "chip_version", "")):
            return 2
    except Exception:
        pass
    return 1


_NUM_TENSORCORES = _num_tensorcores()


def _bce_kernel(o_ref, t_ref, out_ref, *, rows, tile_r, acc_rows,
                blocks_per_core):
    c = pl.program_id(0)   # parallel partial-sum axis (TensorCore split on v7x)
    j = pl.program_id(1)   # reduction axis

    @pl.when(j == 0)
    def _():
        out_ref[...] = jnp.zeros_like(out_ref)

    o = o_ref[...].astype(jnp.float32)
    t = t_ref[...].astype(jnp.float32)

    # torch.nn.BCELoss clamps each log term at -100.
    log_o = jnp.maximum(jnp.log(o), jnp.float32(-100.0))
    log_1mo = jnp.maximum(jnp.log1p(-o), jnp.float32(-100.0))
    # Un-negated BCE term:  t*log(o) + (1-t)*log(1-o) == log_1mo + t*(log_o - log_1mo)
    contrib = log_1mo + t * (log_o - log_1mo)

    block_idx = c * blocks_per_core + j      # logical (un-clamped) block index
    rows_rem = rows - block_idx * tile_r     # valid rows left for this block

    def fold(x):
        # Pure-VPU partial reduce onto the (acc_rows, 128) accumulator slab.
        return jnp.sum(x.reshape(tile_r // acc_rows, acc_rows, LANES), axis=0)

    @pl.when(rows_rem >= tile_r)             # full block: no mask at all
    def _():
        out_ref[...] += fold(contrib)

    @pl.when(rows_rem < tile_r)              # tail / duplicated block: row mask
    def _():
        row_ids = jax.lax.broadcasted_iota(jnp.int32, (tile_r, LANES), 0)
        masked = jnp.where(row_ids < rows_rem, contrib, jnp.float32(0.0))
        out_ref[...] += fold(masked)


def bce_loss_pallas(output, target):
    """Mean BCE loss over all elements (torch.nn.BCELoss semantics)."""
    assert output.shape == target.shape
    n = output.size
    o_flat = output.reshape(-1)
    t_flat = target.reshape(-1)

    itemsize = jnp.dtype(output.dtype).itemsize
    row_align = max(8, 32 // max(itemsize, 1))   # f32: 8, bf16: 16, 8-bit: 32
    rows = n // LANES                            # lane-aligned prefix rows

    total = jnp.float32(0.0)
    covered = 0

    if rows >= row_align:
        # tile_r never exceeds rows -> only the true edge block is partial.
        if rows >= 128:
            tile_r = min(TILE_R_MAX, (rows // 128) * 128)
        else:
            tile_r = (rows // row_align) * row_align
        acc_rows = math.gcd(tile_r, ACC_ROWS_MAX)   # multiple of 8, divides tile_r

        num_blocks = pl.cdiv(rows, tile_r)
        num_partials = _NUM_TENSORCORES if num_blocks >= 2 else 1
        blocks_per_core = pl.cdiv(num_blocks, num_partials)
        last_block = num_blocks - 1

        covered = rows * LANES
        o2d = o_flat[:covered].reshape(rows, LANES)
        t2d = t_flat[:covered].reshape(rows, LANES)

        def in_map(c, j):
            # Clamp so duplicated trailing steps (odd block split across cores)
            # re-read a valid block; their contribution is masked to zero.
            return (jnp.minimum(c * blocks_per_core + j, last_block), 0)

        kernel = functools.partial(
            _bce_kernel, rows=rows, tile_r=tile_r, acc_rows=acc_rows,
            blocks_per_core=blocks_per_core)

        partials = pl.pallas_call(
            kernel,
            out_shape=jax.ShapeDtypeStruct((num_partials * acc_rows, LANES),
                                           jnp.float32),
            grid_spec=pltpu.PrefetchScalarGridSpec(
                num_scalar_prefetch=0,
                grid=(num_partials, blocks_per_core),
                in_specs=[
                    pl.BlockSpec((tile_r, LANES), in_map),
                    pl.BlockSpec((tile_r, LANES), in_map),
                ],
                out_specs=pl.BlockSpec((acc_rows, LANES), lambda c, j: (c, 0)),
            ),
            compiler_params=pltpu.CompilerParams(
                dimension_semantics=("parallel", "arbitrary"),
                vmem_limit_bytes=32 * 1024 * 1024,
            ),
            cost_estimate=pl.CostEstimate(
                flops=8 * covered,
                transcendentals=2 * covered,
                bytes_accessed=2 * covered * int(itemsize)
                + num_partials * acc_rows * LANES * 4,
            ),
        )(o2d, t2d)

        total = total + jnp.sum(partials)

    if covered < n:
        # Ragged tail (< 128 elements, or tiny inputs): plain fused JAX reduce.
        o_t = o_flat[covered:].astype(jnp.float32)
        t_t = t_flat[covered:].astype(jnp.float32)
        log_o = jnp.maximum(jnp.log(o_t), jnp.float32(-100.0))
        log_1mo = jnp.maximum(jnp.log1p(-o_t), jnp.float32(-100.0))
        total = total + jnp.sum(log_1mo + t_t * (log_o - log_1mo))

    # Single negation folded into the final mean.
    return -total / jnp.float32(n)


def bce_loss_ref(output, target):
    o = output.astype(jnp.float32)
    t = target.astype(jnp.float32)
    log_o = jnp.maximum(jnp.log(o), -100.0)
    log_1mo = jnp.maximum(jnp.log1p(-o), -100.0)
    return jnp.mean(-(t * log_o + (1.0 - t) * log_1mo))


if __name__ == "__main__":
    key = jax.random.PRNGKey(0)
    k1, k2 = jax.random.split(key)

    # Small shape consistent with a typical (N, C, H, W) prediction map.
    shape = (2, 4, 16, 16)
    output = jax.nn.sigmoid(jax.random.normal(k1, shape, jnp.float32))
    target = (jax.random.uniform(k2, shape) > 0.5).astype(jnp.float32)

    loss = bce_loss_pallas(output, target)
    jax.block_until_ready(loss)

    ref = bce_loss_ref(output, target)
    assert jnp.allclose(loss, ref, rtol=1e-5, atol=1e-6), (loss, ref)

    print("KERNEL_OK")
</pallas_src>

<mosaic_0001>
module attributes {stable_mosaic.version = 11 : i64} {
  func.func @_bce_kernel(%arg0: i32, %arg1: i32, %arg2: memref<16x128xf32, #tpu.memory_space<vmem>>, %arg3: memref<16x128xf32, #tpu.memory_space<vmem>>, %arg4: memref<16x128xf32, #tpu.memory_space<vmem>>) attributes {dimension_semantics = [#tpu.dimension_semantics<parallel>, #tpu.dimension_semantics<arbitrary>], iteration_bounds = array<i64: 1, 1>, scalar_prefetch = 0 : i64, scratch_operands = 0 : i64, tpu.core_type = #tpu.core_type<tc>, window_params = [{transform_indices = @transform_0, window_bounds = array<i64: 16, 128>}, {transform_indices = @transform_1, window_bounds = array<i64: 16, 128>}, {transform_indices = @transform_2, window_bounds = array<i64: 16, 128>}]} {
    %c0_i32 = arith.constant 0 : i32
    %0 = arith.cmpi eq, %arg1, %c0_i32 : i32
    %1 = arith.extui %0 : i1 to i32
    %c0_i32_0 = arith.constant 0 : i32
    %2 = arith.cmpi ne, %1, %c0_i32_0 : i32
    scf.if %2 {
      %cst_11 = arith.constant 0.000000e+00 : f32
      %26 = vector.broadcast %cst_11 : f32 to vector<16x128xf32>
      %c0_12 = arith.constant 0 : index
      %c0_13 = arith.constant 0 : index
      %27 = vector.load %arg4[%c0_12, %c0_13] : memref<16x128xf32, #tpu.memory_space<vmem>>, vector<16x128xf32>
      tpu.vector_store %arg4[%c0_12, %c0_13], %26 {strides = array<i32>} : memref<16x128xf32, #tpu.memory_space<vmem>>, vector<16x128xf32>,
    } else {
    }
    %c0 = arith.constant 0 : index
    %c0_1 = arith.constant 0 : index
    %3 = vector.load %arg2[%c0, %c0_1] : memref<16x128xf32, #tpu.memory_space<vmem>>, vector<16x128xf32>
    %c0_2 = arith.constant 0 : index
    %c0_3 = arith.constant 0 : index
    %4 = vector.load %arg3[%c0_2, %c0_3] : memref<16x128xf32, #tpu.memory_space<vmem>>, vector<16x128xf32>
    %5 = math.log %3 : vector<16x128xf32>
    %cst = arith.constant -1.000000e+02 : f32
    %6 = vector.broadcast %cst : f32 to vector<16x128xf32>
    %7 = arith.maximumf %5, %6 : vector<16x128xf32>
    %cst_4 = arith.constant 0.000000e+00 : f32
    %8 = vector.broadcast %cst_4 : f32 to vector<16x128xf32>
    %9 = arith.subf %8, %3 : vector<16x128xf32>
    %10 = math.log1p %9 : vector<16x128xf32>
    %cst_5 = arith.constant -1.000000e+02 : f32
    %11 = vector.broadcast %cst_5 : f32 to vector<16x128xf32>
    %12 = arith.maximumf %10, %11 : vector<16x128xf32>
    %13 = arith.subf %7, %12 : vector<16x128xf32>
    %14 = arith.mulf %4, %13 : vector<16x128xf32>
    %15 = arith.addf %12, %14 : vector<16x128xf32>
    %c1_i32 = arith.constant 1 : i32
    %16 = arith.muli %arg0, %c1_i32 : i32
    %17 = arith.addi %16, %arg1 : i32
    %c16_i32 = arith.constant 16 : i32
    %18 = arith.muli %17, %c16_i32 : i32
    %c16_i32_6 = arith.constant 16 : i32
    %19 = arith.subi %c16_i32_6, %18 : i32
    %c16_i32_7 = arith.constant 16 : i32
    %20 = arith.cmpi sge, %19, %c16_i32_7 : i32
    %21 = arith.extui %20 : i1 to i32
    %c0_i32_8 = arith.constant 0 : i32
    %22 = arith.cmpi ne, %21, %c0_i32_8 : i32
    scf.if %22 {
      %c0_11 = arith.constant 0 : index
      %c0_12 = arith.constant 0 : index
      %26 = vector.load %arg4[%c0_11, %c0_12] : memref<16x128xf32, #tpu.memory_space<vmem>>, vector<16x128xf32>
      %27 = vector.shape_cast %15 : vector<16x128xf32> to vector<1x16x128xf32>
      %cst_13 = arith.constant dense<0.000000e+00> : vector<16x128xf32>
      %28 = vector.multi_reduction <add>, %27, %cst_13 [0] : vector<1x16x128xf32> to vector<16x128xf32>
      %29 = arith.addf %26, %28 : vector<16x128xf32>
      %c0_14 = arith.constant 0 : index
      %c0_15 = arith.constant 0 : index
      %30 = vector.load %arg4[%c0_14, %c0_15] : memref<16x128xf32, #tpu.memory_space<vmem>>, vector<16x128xf32>
      tpu.vector_store %arg4[%c0_14, %c0_15], %29 {strides = array<i32>} : memref<16x128xf32, #tpu.memory_space<vmem>>, vector<16x128xf32>,
    } else {
    }
    %c16_i32_9 = arith.constant 16 : i32
    %23 = arith.cmpi slt, %19, %c16_i32_9 : i32
    %24 = arith.extui %23 : i1 to i32
    %c0_i32_10 = arith.constant 0 : i32
    %25 = arith.cmpi ne, %24, %c0_i32_10 : i32
    scf.if %25 {
      %26 = tpu.iota {dimensions = array<i32: 0>} : vector<16x128xi32>
      %27 = vector.broadcast %19 : i32 to vector<16x128xi32>
      %28 = arith.cmpi slt, %26, %27 : vector<16x128xi32>
      %cst_11 = arith.constant 0.000000e+00 : f32
      %29 = vector.broadcast %cst_11 : f32 to vector<16x128xf32>
      %30 = arith.select %28, %15, %29 : vector<16x128xi1>, vector<16x128xf32>
      %c0_12 = arith.constant 0 : index
      %c0_13 = arith.constant 0 : index
      %31 = vector.load %arg4[%c0_12, %c0_13] : memref<16x128xf32, #tpu.memory_space<vmem>>, vector<16x128xf32>
      %32 = vector.shape_cast %30 : vector<16x128xf32> to vector<1x16x128xf32>
      %cst_14 = arith.constant dense<0.000000e+00> : vector<16x128xf32>
      %33 = vector.multi_reduction <add>, %32, %cst_14 [0] : vector<1x16x128xf32> to vector<16x128xf32>
      %34 = arith.addf %31, %33 : vector<16x128xf32>
      %c0_15 = arith.constant 0 : index
      %c0_16 = arith.constant 0 : index
      %35 = vector.load %arg4[%c0_15, %c0_16] : memref<16x128xf32, #tpu.memory_space<vmem>>, vector<16x128xf32>
      tpu.vector_store %arg4[%c0_15, %c0_16], %34 {strides = array<i32>} : memref<16x128xf32, #tpu.memory_space<vmem>>, vector<16x128xf32>,
    } else {
    }
    return
  }
  func.func @transform_0(%arg0: i32, %arg1: i32) -> (i32, i32) {
    %c1_i32 = arith.constant 1 : i32
    %0 = arith.muli %arg0, %c1_i32 : i32
    %1 = arith.addi %0, %arg1 : i32
    %c0_i32 = arith.constant 0 : i32
    %2 = arith.minsi %1, %c0_i32 : i32
    %c0_i32_0 = arith.constant 0 : i32
    %c0_i32_1 = arith.constant 0 : i32
    return %2, %c0_i32_0 : i32, i32
  }
  func.func @transform_1(%arg0: i32, %arg1: i32) -> (i32, i32) {
    %c1_i32 = arith.constant 1 : i32
    %0 = arith.muli %arg0, %c1_i32 : i32
    %1 = arith.addi %0, %arg1 : i32
    %c0_i32 = arith.constant 0 : i32
    %2 = arith.minsi %1, %c0_i32 : i32
    %c0_i32_0 = arith.constant 0 : i32
    %c0_i32_1 = arith.constant 0 : i32
    return %2, %c0_i32_0 : i32, i32
  }
  func.func @transform_2(%arg0: i32, %arg1: i32) -> (i32, i32) {
    %c0_i32 = arith.constant 0 : i32
    %c0_i32_0 = arith.constant 0 : i32
    return %arg0, %c0_i32 : i32, i32
  }
}

</mosaic_0001>

<llo_original>
// kernel: tpu_custom_call.1
$region0: #{tpu_custom_call.1}
  #allocation0 [shape = 'u32[]', space=smem, size = 0x4, offset = 0x4, fixed_abs, tag = 'smem constant byte address 0x4 - core index']
  #allocation1 [shape = 'u32[72,128]{1,0:T(1,128)}', space=vmem, size = 0x9000, scoped, tag = 'internal scratch']
  %s0 = inlined_call_operand.hbm [shape: f32[16,128], index: 0, kind: input, shape index: {}]
  %s1 = inlined_call_operand.hbm [shape: f32[16,128], index: 1, kind: input, shape index: {}]
  %s2 = inlined_call_operand.hbm [shape: f32[16,128], index: 2, kind: output, shape index: {}]
  %s3 = sld [smem:[#allocation0]]
  $region38: #{tpu_custom_call.1} parent=0
    _
  %s5 = ssub.s32 1, %s3
  %s6 = scalar_select 0, %s5, %s3
  $region1: #{tpu_custom_call.1} parent=0
    #allocation2 [shape = 'u8[8192]{0}', space=vmem, size = 0x2000, scoped, tag = 'input window, operand 0, single buffered']
    #allocation3 [shape = 's32[1]{0}', space=sflag, size = 0x4, scoped, tag = 'scoped memory for tpu_custom_call.1']
    #allocation4 [shape = 's32[1]{0}', space=sflag, size = 0x4, scoped, tag = 'scoped memory for tpu_custom_call.1']
    #allocation5 [shape = 'u8[8192]{0}', space=vmem, size = 0x2000, scoped, tag = 'input window, operand 1, single buffered']
    #allocation6 [shape = 's32[1]{0}', space=sflag, size = 0x4, scoped, tag = 'scoped memory for tpu_custom_call.1']
    #allocation7 [shape = 'u8[8192]{0}', space=vmem, size = 0x2000, scoped, tag = 'output window, operand 0, single buffered']
    %7 = vsyncpa [#allocation3], 0
    %8 = vsyncpa [#allocation6], 0
    %9 = vsyncpa [#allocation4], 0
    // Predicated region
    $region2: #{tpu_custom_call.1} parent=1 // pred_check
      _
    $region3: #{tpu_custom_call.1} parent=1 // pred_check_branch
      %11 = sbr.rel (0) target = $region5
    $region4: #{tpu_custom_call.1} parent=1 // pred_region
      %s12 = sadd.s32 0, 0
      %p13 = scmp.lt.s32.totalorder %s12, 0
      %s14 = scalar_select %p13, %s12, 0
      %s15 = smul.u32 2, %s14
      %17 = vsyncadd [#allocation3], 0
      %s18 = smul.addr %s15, 8
      %s19 = scalar_lea.hbm %s0, %s18
      %s20 = sshll.u32 %s19, 4
      %s21 = int_to_ptr.hbm [resolvable:$true] %s20
      %s22 = sshll.u32 [#allocation2], 4
      %s23 = int_to_ptr.vmem [resolvable:$true] %s22
      %28 = dma.hbm_to_vmem [thread:$0]  %s21, 256, %s23, [#allocation3], 128, 128, 8
    $region5: #{tpu_custom_call.1} parent=1 // pred_fallthru
      _
    // Predicated region
    $region6: #{tpu_custom_call.1} parent=1 // pred_check
      _
    $region7: #{tpu_custom_call.1} parent=1 // pred_check_branch
      %30 = sbr.rel (0) target = $region9
    $region8: #{tpu_custom_call.1} parent=1 // pred_region
      %s31 = sadd.s32 0, 0
      %p32 = scmp.lt.s32.totalorder %s31, 0
      %s33 = scalar_select %p32, %s31, 0
      %s34 = smul.u32 2, %s33
      %36 = vsyncadd [#allocation6], 0
      %s37 = smul.addr %s34, 8
      %s38 = scalar_lea.hbm %s1, %s37
      %s39 = sshll.u32 %s38, 4
      %s40 = int_to_ptr.hbm [resolvable:$true] %s39
      %s41 = sshll.u32 [#allocation5], 4
      %s42 = int_to_ptr.vmem [resolvable:$true] %s41
      %47 = dma.hbm_to_vmem [thread:$0]  %s40, 256, %s42, [#allocation6], 128, 128, 8
    $region9: #{tpu_custom_call.1} parent=1 // pred_fallthru
      _
    // Predicated region
    $region10: #{tpu_custom_call.1} parent=1 // pred_check
      _
    $region11: #{tpu_custom_call.1} parent=1 // pred_check_branch
      %49 = sbr.rel (0) target = $region13
    $region12: #{tpu_custom_call.1} parent=1 // pred_region
      %51 = dma.done [#allocation3], 256
    $region13: #{tpu_custom_call.1} parent=1 // pred_fallthru
      _
    // Predicated region
    $region14: #{tpu_custom_call.1} parent=1 // pred_check
      _
    $region15: #{tpu_custom_call.1} parent=1 // pred_check_branch
      %53 = sbr.rel (0) target = $region17
    $region16: #{tpu_custom_call.1} parent=1 // pred_region
      %55 = dma.done [#allocation6], 256
    $region17: #{tpu_custom_call.1} parent=1 // pred_fallthru
      _
    %s56 = sadd.s32 0, 0
    %p57 = scmp.lt.s32.totalorder %s56, 0
    %s58 = scalar_select %p57, %s56, 0
    %s59 = smul.u32 2, %s58
    %s60 = sadd.s32 0, 0
    %p61 = scmp.lt.s32.totalorder %s60, 0
    %s62 = scalar_select %p61, %s60, 0
    %s63 = smul.u32 2, %s62
    %p64 = scmp.eq.s32.totalorder 0, 0
    // Predicated region
    $region18: #{tpu_custom_call.1} parent=1 // pred_check
      %p65 = pneg %p64
    $region19: #{tpu_custom_call.1} parent=1 // pred_check_branch
      %67 = sbr.rel (%p65) target = $region21
    $region20: #{tpu_custom_call.1} parent=1 // pred_region
      %68 = vst [vmem:[#allocation7] sm:$0xff] 0.0
      %69 = vst [vmem:[#allocation7 + $0x8] sm:$0xff] 0.0
    $region21: #{tpu_custom_call.1} parent=1 // pred_fallthru
      _
    %v70 = vld [vmem:[#allocation2] sm:$0xff]
    %v71 = vld [vmem:[#allocation2 + $0x8] sm:$0xff]
    %v72 = vld [vmem:[#allocation5] sm:$0xff]
    %v73 = vld [vmem:[#allocation5 + $0x8] sm:$0xff]
    %v74 = vlog2.pop %v70
    %v75 = vmul.f32 %v74, 0.6931472
    %v76 = vlog2.pop %v71
    %v77 = vmul.f32 %v76, 0.6931472
    %v78 = vmax.f32 %v75, -100.0
    %v79 = vmax.f32 %v77, -100.0
    %v80 = vsub.f32 0.0, %v70
    %v81 = vsub.f32 0.0, %v71
    %v82 = vadd.f32 %v80, 1.0
    %v83 = vlog2.pop %v82
    %v84 = vmul.f32 %v83, 0.6931472
    %v85 = vmul.f32 -0.5, %v80
    %v86 = vadd.f32 %v85, 1.0
    %v87 = vmul.f32 %v86, %v80
    %v88 = vand.u32 2147483647, %v80
    %vm89 = vcmp.lt.f32.partialorder %v88, 0.0004427343
    %v90 = vsel %vm89, %v87, %v84
    %v91 = vadd.f32 %v81, 1.0
    %v92 = vlog2.pop %v91
    %v93 = vmul.f32 %v92, 0.6931472
    %v94 = vmul.f32 -0.5, %v81
    %v95 = vadd.f32 %v94, 1.0
    %v96 = vmul.f32 %v95, %v81
    %v97 = vand.u32 2147483647, %v81
    %vm98 = vcmp.lt.f32.partialorder %v97, 0.0004427343
    %v99 = vsel %vm98, %v96, %v93
    %v100 = vmax.f32 %v90, -100.0
    %v101 = vmax.f32 %v99, -100.0
    %v102 = vsub.f32 %v78, %v100
    %v103 = vsub.f32 %v79, %v101
    %v104 = vmul.f32 %v72, %v102
    %v105 = vmul.f32 %v73, %v103
    %v106 = vadd.f32 %v100, %v104
    %v107 = vadd.f32 %v101, %v105
    %s108 = sadd.s32 0, 0
    %s109 = smul.u32 %s108, 16
    %s110 = ssub.s32 16, %s109
    %p111 = scmp.ge.s32.totalorder %s110, 16
    // Predicated region
    $region22: #{tpu_custom_call.1} parent=1 // pred_check
      %p112 = pneg %p111
    $region23: #{tpu_custom_call.1} parent=1 // pred_check_branch
      %114 = sbr.rel (%p112) target = $region25
    $region24: #{tpu_custom_call.1} parent=1 // pred_region
      %v115 = vld [vmem:[#allocation7] sm:$0xff]
      %v116 = vld [vmem:[#allocation7 + $0x8] sm:$0xff]
      %v117 = vadd.f32 %v106, 0.0
      %v118 = vadd.f32 %v107, 0.0
      %v119 = vadd.f32 %v115, %v117
      %v120 = vadd.f32 %v116, %v118
      %121 = vst [vmem:[#allocation7] sm:$0xff] %v119
      %122 = vst [vmem:[#allocation7 + $0x8] sm:$0xff] %v120
    $region25: #{tpu_custom_call.1} parent=1 // pred_fallthru
      _
    %p123 = scmp.lt.s32.totalorder %s110, 16
    // Predicated region
    $region26: #{tpu_custom_call.1} parent=1 // pred_check
      %p124 = pneg %p123
    $region27: #{tpu_custom_call.1} parent=1 // pred_check_branch
      %126 = sbr.rel (%p124) target = $region29
    $region28: #{tpu_custom_call.1} parent=1 // pred_region
      %v127 = vlaneseq
      %v128 = vshrl.u32 %v127, 7
      %v129 = vadd.s32 %v128, 8
      %v130 = vstv %s110
      %vm131 = vcmp.lt.s32.totalorder %v128, %v130
      %vm132 = vcmp.lt.s32.totalorder %v129, %v130
      %v133 = vsel %vm131, %v106, 0.0
      %v134 = vsel %vm132, %v107, 0.0
      %v135 = vld [vmem:[#allocation7] sm:$0xff]
      %v136 = vld [vmem:[#allocation7 + $0x8] sm:$0xff]
      %v137 = vadd.f32 %v133, 0.0
      %v138 = vadd.f32 %v134, 0.0
      %v139 = vadd.f32 %v135, %v137
      %v140 = vadd.f32 %v136, %v138
      %141 = vst [vmem:[#allocation7] sm:$0xff] %v139
      %142 = vst [vmem:[#allocation7 + $0x8] sm:$0xff] %v140
    $region29: #{tpu_custom_call.1} parent=1 // pred_fallthru
      _
    // Predicated region
    $region30: #{tpu_custom_call.1} parent=1 // pred_check
      _
    $region31: #{tpu_custom_call.1} parent=1 // pred_check_branch
      %144 = sbr.rel (0) target = $region33
    $region32: #{tpu_custom_call.1} parent=1 // pred_region
      %146 = vsyncadd [#allocation4], 0
      %s147 = sshll.u32 [#allocation7], 4
      %s148 = int_to_ptr.vmem [resolvable:$true] %s147
      %s149 = sshll.u32 %s2, 4
      %s150 = int_to_ptr.hbm [resolvable:$true] %s149
      %155 = dma.vmem_to_hbm [thread:$0]  %s148, 256, %s150, [#allocation4], 128, 128, 8
    $region33: #{tpu_custom_call.1} parent=1 // pred_fallthru
      _
    // Predicated region
    $region34: #{tpu_custom_call.1} parent=1 // pred_check
      _
    $region35: #{tpu_custom_call.1} parent=1 // pred_check_branch
      %157 = sbr.rel (0) target = $region37
    $region36: #{tpu_custom_call.1} parent=1 // pred_region
      %159 = dma.done [#allocation4], 256
    $region37: #{tpu_custom_call.1} parent=1 // pred_fallthru
      _
    %160 = vsyncpa [#allocation3], 1
    %161 = vsyncpa [#allocation6], 1
    %162 = vsyncpa [#allocation4], 1

</llo_original>
